<compile_context>
chip_gen: v7x
topology: tpu7x:2x2x1
jax: 0.10.0
libtpu: 0.0.40
codegen_flags: <defaults>
</compile_context>

<pallas_src>
import functools

import jax
import jax.numpy as jnp
from jax import lax
from jax.experimental import pallas as pl
from jax.experimental.pallas import tpu as pltpu


def _round_up(x: int, m: int) -> int:
    return (x + m - 1) // m * m


def _gather_kernel(labels_ref, counts_ref, feats_ref, out_ref, acc_ref,
                   *fsum_scratch, num_classes: int, ignore_index: int,
                   n_gt: int, use_ones_col: bool):
    # labels_ref: (1, 1, tile_n) int32  nearest-resized labels (feat resolution)
    # counts_ref: (1, 1, Kpad)   f32    per-class valid-pixel counts at gt res
    # feats_ref : (1, Cb, tile_n) feats dtype (native precision)
    # out_ref   : (1, Cb, Kpad)  f32    lane-padded context (sliced to K in glue)
    # acc_ref   : (Cb, Kpad)     f32    MXU accumulator (col K = feats row-sum
    #                                   when use_ones_col)
    # fsum_ref  : (Cb, 1)        f32    separate row-sum acc (only K % 128 == 0)
    K = num_classes
    kpad = acc_ref.shape[1]
    n = pl.program_id(2)
    n_last = pl.num_programs(2) - 1

    @pl.when(n == 0)
    def _():
        acc_ref[...] = jnp.zeros_like(acc_ref)
        if not use_ones_col:
            fsum_scratch[0][...] = jnp.zeros_like(fsum_scratch[0])

    labels = labels_ref[0]                              # (1, tn) int32
    feats = feats_ref[0]                                # (Cb, tn) native dtype
    tn = labels.shape[1]

    # Masked one-hot built in int/bool, cast once into the feats dtype (exact
    # 0/1 values) so bf16 feats use the native low-precision MXU path.
    cls = lax.broadcasted_iota(jnp.int32, (kpad, tn), 0)
    valid = labels != ignore_index                                  # (1, tn)
    hit = (jnp.clip(labels, 0, K - 1) == cls) & valid               # (kpad, tn)
    if use_ones_col:
        # Row K is all-ones: accumulates sum_n feats[:, n] (empty-class
        # fallback) at zero extra MXU cost since kpad >= K + 1 already.
        hit = hit | (cls == K)
    w = hit.astype(feats.dtype)                                     # (kpad, tn)

    # Contract the spatial (lane) axis of both operands: (Cb, tn)·(kpad, tn)^T.
    # Same last-dim/last-dim form as flash-attention q·k^T -> no materialized
    # transpose of w; accumulation in f32.
    acc_ref[...] += lax.dot_general(
        feats, w, (((1,), (1,)), ((), ())),
        preferred_element_type=jnp.float32)                         # (Cb, kpad)

    if not use_ones_col:
        # K is a multiple of 128: a ones column would push the MXU output dim
        # across a 128-lane boundary (2x vmatmul), so accumulate the feats
        # row-sum on the otherwise-idle VPU/XLU path instead.
        fsum_scratch[0][...] += jnp.sum(
            feats.astype(jnp.float32), axis=1, keepdims=True)       # (Cb, 1)

    @pl.when(n == n_last)
    def _():
        ctx = acc_ref[...]                                          # (Cb, kpad)
        if use_ones_col:
            fsum = ctx[:, K:K + 1]                                  # (Cb, 1)
        else:
            fsum = fsum_scratch[0][...]                             # (Cb, 1)
        counts = counts_ref[0]                                      # (1, kpad)
        has_px = counts > 0.0
        # Classes with no valid gt pixels use uniform weights 1/N_gt over space.
        denom = jnp.where(has_px, counts, jnp.float32(n_gt))        # (1, kpad)
        out_ref[0] = (jnp.where(has_px, ctx, fsum) / denom).astype(out_ref.dtype)


def _pick_tile_n(n_pad: int, c_blk: int, kpad: int, itemsize: int,
                 budget_bytes: int = 24 << 20) -> int:
    """Largest multiple of 128 dividing n_pad whose per-step VMEM footprint
    (double-buffered feats block + in-kernel one-hot) stays under budget."""
    per_col = (2 * c_blk + 2 * kpad) * itemsize + 64
    max_cols = max(128, (budget_bytes // per_col) // 128 * 128)
    t = min(n_pad, max_cols)
    while n_pad % t != 0:
        t -= 128
    return t


def aux_spatial_gather(feats, gt_seg_map, num_classes, ignore_index=255,
                       tile_n=None, c_split=None, vmem_budget_bytes=24 << 20):
    """feats: (B, C, H, W), any float dtype (kept native; bf16 halves the
    HBM-bound feats stream). gt_seg_map: (B, gH, gW) integer class labels.
    Returns (B, C, num_classes, 1) float32 (matches the PyTorch module)."""
    B, C, H, W = feats.shape
    gH, gW = gt_seg_map.shape[-2:]
    N = H * W
    N_gt = gH * gW
    K = int(num_classes)
    assert K > 0
    feat_dtype = jnp.dtype(feats.dtype)
    itemsize = feat_dtype.itemsize

    # NOTE: like the PyTorch reference, an ignore_index inside [0, K) is simply
    # treated as "invalid" everywhere (consistent with the original module).

    # Lane padding of the class axis. When K % 128 != 0 the empty-class
    # fallback rides a free ones column (K+1 fits in round_up(K,128)); when K
    # is an exact multiple of 128 the fallback is accumulated separately.
    use_ones_col = (K % 128) != 0
    Kpad = _round_up(K + 1, 128) if use_ones_col else K

    # glue: nearest-neighbour resize of labels to the feature resolution
    # (matches F.interpolate(mode='nearest'): src = floor(dst * in / out)).
    h_idx = (jnp.arange(H) * gH) // H
    w_idx = (jnp.arange(W) * gW) // W
    gt_rs = gt_seg_map[:, h_idx][:, :, w_idx].reshape(B, 1, N).astype(jnp.int32)

    # glue: per-class valid-pixel counts at gt resolution (the denominators) --
    # a tiny histogram; the (K, N_gt) gt-resolution one-hot never exists.
    gt_flat = gt_seg_map.reshape(B, N_gt)
    valid_w = (gt_flat != ignore_index).astype(jnp.float32)
    clipped = jnp.clip(gt_flat, 0, K - 1).astype(jnp.int32)
    counts = jax.vmap(
        lambda c, v: jnp.bincount(c, weights=v, length=K))(clipped, valid_w)
    counts = jnp.pad(counts, ((0, 0), (0, Kpad - K)), constant_values=1.0)
    counts = counts.reshape(B, 1, Kpad).astype(jnp.float32)

    # feats stay in (B, C, N) layout and native dtype -- no transpose, no upcast.
    feats_cn = feats.reshape(B, C, N)

    # Pad the spatial axis to a multiple of 128 so the tile never falls back to
    # a full-N block: zero feats columns + ignore labels keep every sum exact.
    N_pad = _round_up(N, 128)
    if N_pad != N:
        feats_cn = jnp.pad(feats_cn, ((0, 0), (0, 0), (0, N_pad - N)))
        gt_rs = jnp.pad(gt_rs, ((0, 0), (0, 0), (0, N_pad - N)),
                        constant_values=ignore_index)

    # Megacore: when the batch alone cannot feed both v7x TensorCores, add a
    # parallel channel-split axis (no effect on single-TC v5e/v6e).
    if c_split is None:
        c_split = 2 if (B == 1 and C >= 16 and C % 16 == 0) else 1
    assert C % c_split == 0, (C, c_split)
    C_blk = C // c_split
    assert C_blk % 8 == 0 or C_blk == C, (C_blk,)

    if tile_n is None:
        tile_n = _pick_tile_n(N_pad, C_blk, Kpad, itemsize, vmem_budget_bytes)
    assert tile_n % 128 == 0 and N_pad % tile_n == 0, (N_pad, tile_n)
    n_tiles = N_pad // tile_n

    # Explicit scoped-VMEM limit so big tiles keep double-buffering on every
    # generation (defaults: 16 MiB v5e / 32 MiB v6e,v7x).
    vmem_est = (2 * C_blk * tile_n * itemsize      # feats double buffer
                + 2 * Kpad * tile_n * itemsize     # one-hot intermediate
                + 2 * 32 * tile_n                  # labels double buffer
                + 2 * 8 * Kpad * 4                 # counts
                + 2 * C_blk * Kpad * 4             # output double buffer
                + C_blk * Kpad * 4 + C_blk * 512)  # accumulators
    vmem_limit = int(min(max(int(vmem_est * 1.5), 32 << 20), 96 << 20))

    kernel = functools.partial(
        _gather_kernel, num_classes=K, ignore_index=ignore_index, n_gt=N_gt,
        use_ones_col=use_ones_col)

    scratch = [pltpu.VMEM((C_blk, Kpad), jnp.float32)]
    if not use_ones_col:
        scratch.append(pltpu.VMEM((C_blk, 1), jnp.float32))

    cost = pl.CostEstimate(
        flops=2 * B * C * N_pad * Kpad,
        transcendentals=0,
        bytes_accessed=int(feats_cn.size * itemsize + gt_rs.size * 4
                           + counts.size * 4 + B * C * Kpad * 4))

    out_ck = pl.pallas_call(
        kernel,
        out_shape=jax.ShapeDtypeStruct((B, C, Kpad), jnp.float32),
        grid=(B, c_split, n_tiles),
        in_specs=[
            pl.BlockSpec((1, 1, tile_n), lambda b, c, n: (b, 0, n)),     # labels
            pl.BlockSpec((1, 1, Kpad), lambda b, c, n: (b, 0, 0)),       # counts
            pl.BlockSpec((1, C_blk, tile_n), lambda b, c, n: (b, c, n)),  # feats
        ],
        out_specs=pl.BlockSpec((1, C_blk, Kpad), lambda b, c, n: (b, c, 0)),
        scratch_shapes=scratch,
        compiler_params=pltpu.CompilerParams(
            dimension_semantics=("parallel", "parallel", "arbitrary"),
            vmem_limit_bytes=vmem_limit),
        cost_estimate=cost,
    )(gt_rs, counts, feats_cn)                                      # (B, C, Kpad)

    # glue: drop lane padding, add the trailing unit axis -> (B, C, K, 1).
    return out_ck[:, :, :K, None]


def _reference(feats, gt, num_classes, ignore_index):
    """Pure-JAX transcription of the PyTorch forward (for verification)."""
    B, C, H, W = feats.shape
    target = gt.reshape(B, -1)
    valid = target != ignore_index
    oh = jax.nn.one_hot(jnp.clip(target, 0, num_classes - 1), num_classes)
    w = jnp.transpose(oh, (0, 2, 1)).astype(jnp.float32)            # (B, K, N_gt)
    w = jnp.where(valid[:, None, :], w, 0.0)
    s = jnp.sum(w, axis=2, keepdims=True)
    w = jnp.where(s > 0.0, w, jnp.ones_like(w))
    w = w / jnp.sum(w, axis=2, keepdims=True)
    gH, gW = gt.shape[-2:]
    w = w.reshape(B, num_classes, gH, gW)
    h_idx = (jnp.arange(H) * gH) // H
    w_idx = (jnp.arange(W) * gW) // W
    w = w[:, :, h_idx][:, :, :, w_idx].reshape(B, num_classes, -1)
    f = jnp.transpose(feats.reshape(B, C, -1), (0, 2, 1))
    out = jnp.einsum('bkn,bnc->bkc', w, f.astype(jnp.float32))
    return jnp.transpose(out, (0, 2, 1))[..., None]


if __name__ == "__main__":
    root = jax.random.PRNGKey(0)
    ignore_index = 255

    def make_inputs(key, B, C, H, W, gH, gW, hi, p_ignore, dtype):
        kf, kg, ki = jax.random.split(key, 3)
        feats = jax.random.normal(kf, (B, C, H, W), jnp.float32).astype(dtype)
        gt = jax.random.randint(kg, (B, gH, gW), 0, hi, dtype=jnp.int32)
        gt = jnp.where(jax.random.bernoulli(ki, p_ignore, (B, gH, gW)),
                       ignore_index, gt)
        return feats, gt

    k1, k2, k3 = jax.random.split(root, 3)

    # 1) f32, B=2, non-128-multiple spatial size (exercises the zero/ignore
    #    padding) with tile_n=128 (exercises the multi-tile accumulator path);
    #    two classes are empty -> uniform-weight fallback exercised.
    B, C, H, W, gH, gW, K = 2, 16, 16, 12, 32, 32, 8
    feats, gt = make_inputs(k1, B, C, H, W, gH, gW, K - 2, 0.1, jnp.float32)
    out = jax.block_until_ready(
        aux_spatial_gather(feats, gt, K, ignore_index, tile_n=128))
    ref = _reference(feats, gt, K, ignore_index)
    assert out.shape == (B, C, K, 1), out.shape
    assert jnp.allclose(out, ref, atol=1e-5, rtol=1e-5), float(
        jnp.max(jnp.abs(out - ref)))

    # 2) bf16 feats (native-precision MXU path, f32 accumulation), B=1 ->
    #    channel-split parallel axis so both v7x TensorCores get work.
    B, C, H, W, gH, gW, K = 1, 16, 16, 16, 32, 32, 8
    feats, gt = make_inputs(k2, B, C, H, W, gH, gW, K - 2, 0.1, jnp.bfloat16)
    out = jax.block_until_ready(aux_spatial_gather(feats, gt, K, ignore_index))
    ref = _reference(feats.astype(jnp.float32), gt, K, ignore_index)
    assert out.shape == (B, C, K, 1), out.shape
    assert jnp.allclose(out, ref, atol=1e-2, rtol=1e-2), float(
        jnp.max(jnp.abs(out - ref)))

    # 3) K an exact multiple of 128 -> separate row-sum accumulator path (no
    #    ones column pushing the MXU output across a 128-lane boundary).
    B, C, H, W, gH, gW, K = 1, 8, 8, 8, 8, 8, 128
    feats, gt = make_inputs(k3, B, C, H, W, gH, gW, 5, 0.1, jnp.float32)
    out = jax.block_until_ready(aux_spatial_gather(feats, gt, K, ignore_index))
    ref = _reference(feats, gt, K, ignore_index)
    assert out.shape == (B, C, K, 1), out.shape
    assert jnp.allclose(out, ref, atol=1e-5, rtol=1e-5), float(
        jnp.max(jnp.abs(out - ref)))

    print("KERNEL_OK")
</pallas_src>

<mosaic_0001>
module attributes {stable_mosaic.version = 11 : i64} {
  func.func @_gather_kernel(%arg0: i32, %arg1: i32, %arg2: i32, %arg3: memref<1x1x128xi32, #tpu.memory_space<vmem>>, %arg4: memref<1x1x128xf32, #tpu.memory_space<vmem>>, %arg5: memref<1x16x128xf32, #tpu.memory_space<vmem>>, %arg6: memref<1x16x128xf32, #tpu.memory_space<vmem>>, %arg7: memref<16x128xf32, #tpu.memory_space<vmem>>) attributes {dimension_semantics = [#tpu.dimension_semantics<parallel>, #tpu.dimension_semantics<parallel>, #tpu.dimension_semantics<arbitrary>], iteration_bounds = array<i64: 2, 1, 2>, scalar_prefetch = 0 : i64, scratch_operands = 1 : i64, tpu.core_type = #tpu.core_type<tc>, window_params = [{transform_indices = @transform_0, window_bounds = array<i64: 1, 1, 128>}, {transform_indices = @transform_1, window_bounds = array<i64: 1, 1, 128>}, {transform_indices = @transform_2, window_bounds = array<i64: 1, 16, 128>}, {transform_indices = @transform_3, window_bounds = array<i64: 1, 16, 128>}]} {
    %c0_i32 = arith.constant 0 : i32
    %0 = arith.cmpi eq, %arg2, %c0_i32 : i32
    %1 = arith.extui %0 : i1 to i32
    %c0_i32_0 = arith.constant 0 : i32
    %2 = arith.cmpi ne, %1, %c0_i32_0 : i32
    scf.if %2 {
      %cst_12 = arith.constant 0.000000e+00 : f32
      %30 = vector.broadcast %cst_12 : f32 to vector<16x128xf32>
      %c0_13 = arith.constant 0 : index
      %c0_14 = arith.constant 0 : index
      %31 = vector.load %arg7[%c0_13, %c0_14] : memref<16x128xf32, #tpu.memory_space<vmem>>, vector<16x128xf32>
      tpu.vector_store %arg7[%c0_13, %c0_14], %30 {strides = array<i32>} : memref<16x128xf32, #tpu.memory_space<vmem>>, vector<16x128xf32>,
    } else {
    }
    %c0 = arith.constant 0 : index
    %c0_1 = arith.constant 0 : index
    %c0_2 = arith.constant 0 : index
    %3 = vector.load %arg3[%c0, %c0_1, %c0_2] : memref<1x1x128xi32, #tpu.memory_space<vmem>>, vector<1x1x128xi32>
    %4 = vector.shape_cast %3 : vector<1x1x128xi32> to vector<1x128xi32>
    %c0_3 = arith.constant 0 : index
    %c0_4 = arith.constant 0 : index
    %c0_5 = arith.constant 0 : index
    %5 = vector.load %arg5[%c0_3, %c0_4, %c0_5] : memref<1x16x128xf32, #tpu.memory_space<vmem>>, vector<1x16x128xf32>
    %6 = vector.shape_cast %5 : vector<1x16x128xf32> to vector<16x128xf32>
    %7 = tpu.iota {dimensions = array<i32: 0>} : vector<128x128xi32>
    %c255_i32 = arith.constant 255 : i32
    %8 = vector.broadcast %c255_i32 : i32 to vector<1x128xi32>
    %9 = arith.cmpi ne, %4, %8 : vector<1x128xi32>
    %c0_i32_6 = arith.constant 0 : i32
    %c7_i32 = arith.constant 7 : i32
    %10 = vector.broadcast %c0_i32_6 : i32 to vector<1x128xi32>
    %11 = arith.maxsi %10, %4 : vector<1x128xi32>
    %12 = vector.broadcast %c7_i32 : i32 to vector<1x128xi32>
    %13 = arith.minsi %12, %11 : vector<1x128xi32>
    %14 = vector.broadcast %13 : vector<1x128xi32> to vector<128x128xi32>
    %15 = arith.cmpi eq, %14, %7 : vector<128x128xi32>
    %16 = vector.broadcast %9 : vector<1x128xi1> to vector<128x128xi1>
    %17 = arith.andi %15, %16 : vector<128x128xi1>
    %c8_i32 = arith.constant 8 : i32
    %18 = vector.broadcast %c8_i32 : i32 to vector<128x128xi32>
    %19 = arith.cmpi eq, %7, %18 : vector<128x128xi32>
    %20 = arith.ori %17, %19 : vector<128x128xi1>
    %21 = arith.extui %20 : vector<128x128xi1> to vector<128x128xi32>
    %22 = arith.sitofp %21 : vector<128x128xi32> to vector<128x128xf32>
    %c0_7 = arith.constant 0 : index
    %c0_8 = arith.constant 0 : index
    %23 = vector.load %arg7[%c0_7, %c0_8] : memref<16x128xf32, #tpu.memory_space<vmem>>, vector<16x128xf32>
    %cst = arith.constant dense<0.000000e+00> : vector<16x128xf32>
    %24 = tpu.matmul %6, %22, %cst {dimension_numbers = #tpu.dot_dimension_numbers<[1], [1], [0], [0], [0, 0, 1, 0], [], []>} : vector<16x128xf32>, vector<128x128xf32>, vector<16x128xf32> -> vector<16x128xf32>
    %25 = arith.addf %23, %24 : vector<16x128xf32>
    %c0_9 = arith.constant 0 : index
    %c0_10 = arith.constant 0 : index
    %26 = vector.load %arg7[%c0_9, %c0_10] : memref<16x128xf32, #tpu.memory_space<vmem>>, vector<16x128xf32>
    tpu.vector_store %arg7[%c0_9, %c0_10], %25 {strides = array<i32>} : memref<16x128xf32, #tpu.memory_space<vmem>>, vector<16x128xf32>,
    %c1_i32 = arith.constant 1 : i32
    %27 = arith.cmpi eq, %arg2, %c1_i32 : i32
    %28 = arith.extui %27 : i1 to i32
    %c0_i32_11 = arith.constant 0 : i32
    %29 = arith.cmpi ne, %28, %c0_i32_11 : i32
    scf.if %29 {
      %c0_12 = arith.constant 0 : index
      %c0_13 = arith.constant 0 : index
      %30 = vector.load %arg7[%c0_12, %c0_13] : memref<16x128xf32, #tpu.memory_space<vmem>>, vector<16x128xf32>
      %31 = vector.extract_strided_slice %30 {offsets = [0, 8], sizes = [16, 1], strides = [1, 1]} : vector<16x128xf32> to vector<16x1xf32>
      %c0_14 = arith.constant 0 : index
      %c0_15 = arith.constant 0 : index
      %c0_16 = arith.constant 0 : index
      %32 = vector.load %arg4[%c0_14, %c0_15, %c0_16] : memref<1x1x128xf32, #tpu.memory_space<vmem>>, vector<1x1x128xf32>
      %33 = vector.shape_cast %32 : vector<1x1x128xf32> to vector<1x128xf32>
      %cst_17 = arith.constant 0.000000e+00 : f32
      %34 = vector.broadcast %cst_17 : f32 to vector<1x128xf32>
      %35 = arith.cmpf ogt, %33, %34 : vector<1x128xf32>
      %cst_18 = arith.constant 1.024000e+03 : f32
      %36 = vector.broadcast %cst_18 : f32 to vector<1x128xf32>
      %37 = arith.select %35, %33, %36 : vector<1x128xi1>, vector<1x128xf32>
      %38 = vector.shape_cast %35 : vector<1x128xi1> to vector<1x128xi1>
      %39 = vector.broadcast %38 : vector<1x128xi1> to vector<16x128xi1>
      %40 = vector.shape_cast %31 : vector<16x1xf32> to vector<16x1xf32>
      %41 = vector.broadcast %40 : vector<16x1xf32> to vector<16x128xf32>
      %42 = arith.select %39, %30, %41 : vector<16x128xi1>, vector<16x128xf32>
      %43 = vector.broadcast %37 : vector<1x128xf32> to vector<16x128xf32>
      %44 = arith.divf %42, %43 : vector<16x128xf32>
      %c0_19 = arith.constant 0 : index
      %c0_20 = arith.constant 0 : index
      %c0_21 = arith.constant 0 : index
      %45 = vector.load %arg6[%c0_19, %c0_20, %c0_21] : memref<1x16x128xf32, #tpu.memory_space<vmem>>, vector<1x16x128xf32>
      %46 = vector.shape_cast %45 : vector<1x16x128xf32> to vector<16x128xf32>
      %47 = vector.shape_cast %44 : vector<16x128xf32> to vector<1x16x128xf32>
      tpu.vector_store %arg6[%c0_19, %c0_20, %c0_21], %47 {strides = array<i32>} : memref<1x16x128xf32, #tpu.memory_space<vmem>>, vector<1x16x128xf32>,
    } else {
    }
    return
  }
  func.func @transform_0(%arg0: i32, %arg1: i32, %arg2: i32) -> (i32, i32, i32) {
    %c0_i32 = arith.constant 0 : i32
    %c0_i32_0 = arith.constant 0 : i32
    return %arg0, %c0_i32, %arg2 : i32, i32, i32
  }
  func.func @transform_1(%arg0: i32, %arg1: i32, %arg2: i32) -> (i32, i32, i32) {
    %c0_i32 = arith.constant 0 : i32
    %c0_i32_0 = arith.constant 0 : i32
    %c0_i32_1 = arith.constant 0 : i32
    return %arg0, %c0_i32, %c0_i32_0 : i32, i32, i32
  }
  func.func @transform_2(%arg0: i32, %arg1: i32, %arg2: i32) -> (i32, i32, i32) {
    %c0_i32 = arith.constant 0 : i32
    return %arg0, %arg1, %arg2 : i32, i32, i32
  }
  func.func @transform_3(%arg0: i32, %arg1: i32, %arg2: i32) -> (i32, i32, i32) {
    %c0_i32 = arith.constant 0 : i32
    %c0_i32_0 = arith.constant 0 : i32
    return %arg0, %arg1, %c0_i32 : i32, i32, i32
  }
}

</mosaic_0001>

<llo_original>
// kernel: tpu_custom_call.1
$region0: #{tpu_custom_call.1}
  #allocation0 [shape = 'u32[]', space=smem, size = 0x4, offset = 0x4, fixed_abs, tag = 'smem constant byte address 0x4 - core index']
  #allocation1 [shape = 'u32[144,128]{1,0:T(1,128)}', space=vmem, size = 0x12000, scoped, tag = 'internal scratch']
  #allocation2 [shape = 'f32[16,128]{1,0:T(8,128)}', space=vmem, size = 0x2000, scoped, tag = 'scratch operand']
  %s0 = inlined_call_operand.hbm [shape: s32[2,1,256], index: 0, kind: input, shape index: {}]
  %s1 = inlined_call_operand.vmem [shape: f32[2,1,128], index: 1, kind: input, shape index: {}]
  %s2 = inlined_call_operand.hbm [shape: f32[2,16,256], index: 2, kind: input, shape index: {}]
  %s3 = inlined_call_operand.hbm [shape: f32[2,16,128], index: 3, kind: output, shape index: {}]
  %s4 = sld [smem:[#allocation0]]
  $region61: #{tpu_custom_call.1} parent=0
    _
  %s6 = ssub.s32 1, %s4
  %s7 = scalar_select 0, %s6, %s4
  $region1: #{tpu_custom_call.1} parent=0
    #allocation3 [shape = 'u8[1024]{0}', space=vmem, size = 0x400, scoped, tag = 'input window, operand 0']
    #allocation4 [shape = 's32[2]{0}', space=sflag, size = 0x8, scoped, tag = 'scoped memory for tpu_custom_call.1']
    #allocation5 [shape = 's32[2]{0}', space=sflag, size = 0x8, scoped, tag = 'scoped memory for tpu_custom_call.1']
    #allocation6 [shape = 'u8[16384]{0}', space=vmem, size = 0x4000, scoped, tag = 'input window, operand 2']
    #allocation7 [shape = 's32[2]{0}', space=sflag, size = 0x8, scoped, tag = 'scoped memory for tpu_custom_call.1']
    #allocation8 [shape = 'u8[16384]{0}', space=vmem, size = 0x4000, scoped, tag = 'output window, operand 0']
    %8 = vsyncpa [#allocation4], 0
    %s9 = scalar_lea.sflag [#allocation4], 1
    %10 = vsyncpa %s9, 0
    %11 = vsyncpa [#allocation7], 0
    %s12 = scalar_lea.sflag [#allocation7], 1
    %13 = vsyncpa %s12, 0
    %14 = vsyncpa [#allocation5], 0
    %s15 = scalar_lea.sflag [#allocation5], 1
    %16 = vsyncpa %s15, 0
    loop: start=0, step=1, limit=6
    $region2: #{tpu_custom_call.1} parent=1 // loop_pre_header
      _
    $region3: #{tpu_custom_call.1} parent=1 // loop_header
      %s18 = sphi 0, %s22
      %p19 = scmp.ge.s32.totalorder %s18, 6
      %s25 = sphi 0, %s44
      %s26 = sphi 0, %s40
      %s27 = sphi 0, %s36
      %s28 = sphi 0, %s25
      %s29 = sphi 0, %s26
      %s30 = sphi 0, %s27
      %s31 = sphi 0, %s28
      %s32 = sphi 0, %s29
      %s33 = sphi 0, %s30
      %s49 = sphi 0, %s51
      %s52 = sphi 0, %s49
      %s53 = sphi 0, %s52
      %s69 = sphi 0, %s53
      %s75 = sphi 0, %s77
      %s78 = sphi 0, %s75
      %s79 = sphi 0, %s78
      %s95 = sphi 0, %s79
      %s105 = sphi 0, %s107
      %s108 = sphi 0, %s105
      %s109 = sphi 0, %s108
      %s125 = sphi 0, %s109
      %s133 = sphi 0, %s135
      %s136 = sphi 0, %s133
      %s137 = sphi 0, %s136
      %s153 = sphi 0, %s137
    $region4: #{tpu_custom_call.1} parent=1 // loop_header_branch
      %21 = sbr.rel (%p19) target = $region8
    $region5: #{tpu_custom_call.1} parent=1 // loop_body
      %s23 = ssub.s32 %s18, 1
      %s24 = ssub.s32 %s18, 2
      %s34 = sadd.s32 1, %s27
      %p35 = scmp.ge.s32.totalorder %s34, 2
      %s36 = scalar_select %p35, 0, %s34
      %s37 = sadd.s32 1, %s26
      %s38 = scalar_select %p35, %s37, %s26
      %p39 = scmp.ge.s32.totalorder %s38, 1
      %s40 = scalar_select %p39, 0, %s38
      %s41 = sadd.s32 1, %s25
      %s42 = scalar_select %p39, %s41, %s25
      %p43 = scmp.ge.s32.totalorder %s42, 2
      %s44 = scalar_select %p43, 0, %s42
      %s45 = ssub.s32 %s25, %s44
      %s46 = ssub.s32 %s27, %s36
      %s47 = sor.u32 %s45, %s46
      %p48 = scmp.eq.s32.totalorder %s47, 0
      %s50 = sadd.s32 %s49, 1
      %s51 = scalar_select %p48, %s49, %s50
      %p54 = pneg %p48
      %p55 = scmp.eq.s32.totalorder %s18, 3
      %p56 = por %p54, %p55
      %p57 = scmp.ne.s32.totalorder %s49, %s52
      %p58 = scmp.eq.s32.totalorder %s18, 0
      %p59 = por %p57, %p58
      %p60 = scmp.ne.s32.totalorder %s49, %s52
      %p61 = scmp.eq.s32.totalorder %s23, 3
      %p62 = por %p60, %p61
      %p63 = scmp.ne.s32.totalorder %s52, %s53
      %p64 = scmp.eq.s32.totalorder %s23, 0
      %p65 = por %p63, %p64
      %p66 = scmp.ne.s32.totalorder %s52, %s53
      %p67 = scmp.eq.s32.totalorder %s24, 3
      %p68 = por %p66, %p67
      %p70 = scmp.ne.s32.totalorder %s53, %s69
      %p71 = scmp.eq.s32.totalorder %s24, 0
      %p72 = por %p70, %p71
      %s73 = ssub.s32 %s25, %s44
      %p74 = scmp.eq.s32.totalorder %s73, 0
      %s76 = sadd.s32 %s75, 1
      %s77 = scalar_select %p74, %s75, %s76
      %p80 = pneg %p74
      %p81 = scmp.eq.s32.totalorder %s18, 3
      %p82 = por %p80, %p81
      %p83 = scmp.ne.s32.totalorder %s75, %s78
      %p84 = scmp.eq.s32.totalorder %s18, 0
      %p85 = por %p83, %p84
      %p86 = scmp.ne.s32.totalorder %s75, %s78
      %p87 = scmp.eq.s32.totalorder %s23, 3
      %p88 = por %p86, %p87
      %p89 = scmp.ne.s32.totalorder %s78, %s79
      %p90 = scmp.eq.s32.totalorder %s23, 0
      %p91 = por %p89, %p90
      %p92 = scmp.ne.s32.totalorder %s78, %s79
      %p93 = scmp.eq.s32.totalorder %s24, 3
      %p94 = por %p92, %p93
      %p96 = scmp.ne.s32.totalorder %s79, %s95
      %p97 = scmp.eq.s32.totalorder %s24, 0
      %p98 = por %p96, %p97
      %s99 = ssub.s32 %s25, %s44
      %s100 = ssub.s32 %s26, %s40
      %s101 = sor.u32 %s99, %s100
      %s102 = ssub.s32 %s27, %s36
      %s103 = sor.u32 %s101, %s102
      %p104 = scmp.eq.s32.totalorder %s103, 0
      %s106 = sadd.s32 %s105, 1
      %s107 = scalar_select %p104, %s105, %s106
      %p110 = pneg %p104
      %p111 = scmp.eq.s32.totalorder %s18, 3
      %p112 = por %p110, %p111
      %p113 = scmp.ne.s32.totalorder %s105, %s108
      %p114 = scmp.eq.s32.totalorder %s18, 0
      %p115 = por %p113, %p114
      %p116 = scmp.ne.s32.totalorder %s105, %s108
      %p117 = scmp.eq.s32.totalorder %s23, 3
      %p118 = por %p116, %p117
      %p119 = scmp.ne.s32.totalorder %s108, %s109
      %p120 = scmp.eq.s32.totalorder %s23, 0
      %p121 = por %p119, %p120
      %p122 = scmp.ne.s32.totalorder %s108, %s109
      %p123 = scmp.eq.s32.totalorder %s24, 3
      %p124 = por %p122, %p123
      %p126 = scmp.ne.s32.totalorder %s109, %s125
      %p127 = scmp.eq.s32.totalorder %s24, 0
      %p128 = por %p126, %p127
      %s129 = ssub.s32 %s25, %s44
      %s130 = ssub.s32 %s26, %s40
      %s131 = sor.u32 %s129, %s130
      %p132 = scmp.eq.s32.totalorder %s131, 0
      %s134 = sadd.s32 %s133, 1
      %s135 = scalar_select %p132, %s133, %s134
      %p138 = pneg %p132
      %p139 = scmp.eq.s32.totalorder %s18, 3
      %p140 = por %p138, %p139
      %p141 = scmp.ne.s32.totalorder %s133, %s136
      %p142 = scmp.eq.s32.totalorder %s18, 0
      %p143 = por %p141, %p142
      %p144 = scmp.ne.s32.totalorder %s133, %s136
      %p145 = scmp.eq.s32.totalorder %s23, 3
      %p146 = por %p144, %p145
      %p147 = scmp.ne.s32.totalorder %s136, %s137
      %p148 = scmp.eq.s32.totalorder %s23, 0
      %p149 = por %p147, %p148
      %p150 = scmp.ne.s32.totalorder %s136, %s137
      %p151 = scmp.eq.s32.totalorder %s24, 3
      %p152 = por %p150, %p151
      %p154 = scmp.ne.s32.totalorder %s137, %s153
      %p155 = scmp.eq.s32.totalorder %s24, 0
      %p156 = por %p154, %p155
      %p157 = scmp.le.s32.totalorder 1, %s18
      %p158 = scmp.lt.s32.totalorder %s18, 5
      %p159 = pnand %p157, %p158
      %p160 = pneg %p159
      // Predicated region
      $region9: #{tpu_custom_call.1} parent=5 // pred_check
        _
      $region10: #{tpu_custom_call.1} parent=5 // pred_check_branch
        %162 = sbr.rel (%p159) target = $region12
      $region11: #{tpu_custom_call.1} parent=5 // pred_region
        %s163 = ssub.s32 %s18, 1
      $region12: #{tpu_custom_call.1} parent=5 // pred_fallthru
        _
      %p164 = scmp.lt.s32.totalorder %s18, 4
      // Predicated region
      $region13: #{tpu_custom_call.1} parent=5 // pred_check
        %p165 = pneg %p164
      $region14: #{tpu_custom_call.1} parent=5 // pred_check_branch
        %167 = sbr.rel (%p165) target = $region16
      $region15: #{tpu_custom_call.1} parent=5 // pred_region
        // Predicated region
        $region17: #{tpu_custom_call.1} parent=15 // pred_check
          %p168 = pneg %p59
        $region18: #{tpu_custom_call.1} parent=15 // pred_check_branch
          %170 = sbr.rel (%p168) target = $region20
        $region19: #{tpu_custom_call.1} parent=15 // pred_region
          %s171 = sand.u32 %s49, 1
          %s172 = scalar_lea.sflag [#allocation4], %s171
          %s173 = sand.u32 %s49, 1
          %s174 = scalar_lea.vmem [#allocation3], %s173
          %s176 = ssub.s32 16, 16
          %177 = vsyncadd %s172, %s176
          %s178 = smul.addr %s25, 2
          %s179 = sadd.s32 %s27, %s178
          %s180 = smul.addr %s179, 16
          %s181 = scalar_lea.hbm %s0, %s180
          %s183 = sshll.u32 %s174, 4
          %s184 = int_to_ptr.vmem [resolvable:$true] %s183
          %186 = dma.hbm_to_vmem [thread:$0]  %s181, 16, %s184, %s172
        $region20: #{tpu_custom_call.1} parent=15 // pred_fallthru
          _
        // Predicated region
        $region21: #{tpu_custom_call.1} parent=15 // pred_check
          %p187 = pneg %p85
        $region22: #{tpu_custom_call.1} parent=15 // pred_check_branch
          %189 = sbr.rel (%p187) target = $region24
        $region23: #{tpu_custom_call.1} parent=15 // pred_region
          %p190 = scmp.lt.s32.totalorder %s25, 1
          %s191 = scalar_select %p190, %s25, 1
          %s192 = scalar_lea.vmem %s1, %s191
        $region24: #{tpu_custom_call.1} parent=15 // pred_fallthru
          _
        // Predicated region
        $region25: #{tpu_custom_call.1} parent=15 // pred_check
          %p193 = pneg %p115
        $region26: #{tpu_custom_call.1} parent=15 // pred_check_branch
          %195 = sbr.rel (%p193) target = $region28
        $region27: #{tpu_custom_call.1} parent=15 // pred_region
          %s196 = sand.u32 %s105, 1
          %s197 = scalar_lea.sflag [#allocation7], %s196
          %s198 = sand.u32 %s105, 1
          %s199 = smul.addr %s198, 16
          %s200 = scalar_lea.vmem [#allocation6], %s199
          %s201 = smul.u32 2, %s26
          %s203 = ssub.s32 256, 256
          %204 = vsyncadd %s197, %s203
          %s205 = smul.addr %s201, 2
          %s206 = sadd.s32 %s27, %s205
          %s207 = smul.addr %s25, 4
          %s208 = sadd.s32 %s206, %s207
          %s209 = smul.addr %s208, 128
          %s210 = scalar_lea.hbm %s2, %s209
          %s211 = sshll.u32 %s200, 4
          %s212 = int_to_ptr.vmem [resolvable:$true] %s211
          %217 = dma.hbm_to_vmem [thread:$0]  %s210, 256, %s212, %s197, 256, 128, 8
        $region28: #{tpu_custom_call.1} parent=15 // pred_fallthru
          _
      $region16: #{tpu_custom_call.1} parent=5 // pred_fallthru
        _
      %p218 = scmp.le.s32.totalorder 1, %s18
      %p219 = scmp.lt.s32.totalorder %s18, 5
      %p220 = pnand %p218, %p219
      %p221 = pneg %p220
      // Predicated region
      $region29: #{tpu_custom_call.1} parent=5 // pred_check
        _
      $region30: #{tpu_custom_call.1} parent=5 // pred_check_branch
        %223 = sbr.rel (%p220) target = $region32
      $region31: #{tpu_custom_call.1} parent=5 // pred_region
        %s224 = ssub.s32 %s18, 1
        %s225 = sand.u32 %s52, 1
        %s226 = scalar_lea.sflag [#allocation4], %s225
        %s227 = sand.u32 %s52, 1
        %s228 = scalar_lea.vmem [#allocation3], %s227
        // Predicated region
        $region33: #{tpu_custom_call.1} parent=31 // pred_check
          %p229 = pneg %p65
        $region34: #{tpu_custom_call.1} parent=31 // pred_check_branch
          %231 = sbr.rel (%p229) target = $region36
        $region35: #{tpu_custom_call.1} parent=31 // pred_region
          %232 = dma.done %s226, 16
        $region36: #{tpu_custom_call.1} parent=31 // pred_fallthru
          _
        %s233 = sand.u32 %s108, 1
        %s234 = scalar_lea.sflag [#allocation7], %s233
        %s235 = sand.u32 %s108, 1
        %s236 = smul.addr %s235, 16
        %s237 = scalar_lea.vmem [#allocation6], %s236
        // Predicated region
        $region37: #{tpu_custom_call.1} parent=31 // pred_check
          %p238 = pneg %p121
        $region38: #{tpu_custom_call.1} parent=31 // pred_check_branch
          %240 = sbr.rel (%p238) target = $region40
        $region39: #{tpu_custom_call.1} parent=31 // pred_region
          %241 = dma.done %s234, 256
        $region40: #{tpu_custom_call.1} parent=31 // pred_fallthru
          _
        %s242 = sand.u32 %s52, 1
        %s243 = scalar_lea.sflag [#allocation4], %s242
        %s244 = sand.u32 %s52, 1
        %s245 = scalar_lea.vmem [#allocation3], %s244
        %p246 = pneg %p65
        %p247 = pneg %p62
        %p248 = scmp.lt.s32.totalorder %s28, 1
        %s249 = scalar_select %p248, %s28, 1
        %s250 = scalar_lea.vmem %s1, %s249
        %p251 = pneg %p91
        %p252 = pneg %p88
        %s253 = sand.u32 %s108, 1
        %s254 = scalar_lea.sflag [#allocation7], %s253
        %s255 = sand.u32 %s108, 1
        %s256 = smul.addr %s255, 16
        %s257 = scalar_lea.vmem [#allocation6], %s256
        %p258 = pneg %p121
        %p259 = pneg %p118
        %p260 = pneg %p149
        %p261 = pneg %p146
        %s262 = sand.u32 %s136, 1
        %s263 = scalar_lea.sflag [#allocation5], %s262
        %s264 = sand.u32 %s136, 1
        %s265 = smul.addr %s264, 16
        %s266 = scalar_lea.vmem [#allocation8], %s265
        %p267 = scmp.lt.s32.totalorder %s28, 1
        %s268 = scalar_select %p267, %s28, 1
        %s269 = scalar_lea.vmem %s1, %s268
        %s270 = smul.u32 2, %s29
        %s271 = smul.u32 2, %s29
        %p272 = scmp.eq.s32.totalorder %s30, 0
        // Predicated region
        $region41: #{tpu_custom_call.1} parent=31 // pred_check
          %p273 = pneg %p272
        $region42: #{tpu_custom_call.1} parent=31 // pred_check_branch
          %275 = sbr.rel (%p273) target = $region44
        $region43: #{tpu_custom_call.1} parent=31 // pred_region
          %276 = vst [vmem:[#allocation2] sm:$0xff] 0.0
          %277 = vst [vmem:[#allocation2 + $0x8] sm:$0xff] 0.0
        $region44: #{tpu_custom_call.1} parent=31 // pred_fallthru
          _
        %v278 = vld [vmem:[%s228] sm:$0x1]
        %v279 = vld [vmem:[%s237] sm:$0xff]
        %v280 = vld [vmem:[%s237 + $0x8] sm:$0xff]
        %v281 = vlaneseq
        %v282 = vshrl.u32 %v281, 7
        %v283 = vadd.s32 %v282, 8
        %v284 = vadd.s32 %v282, 16
        %v285 = vadd.s32 %v282, 24
        %v286 = vadd.s32 %v282, 32
        %v287 = vadd.s32 %v282, 40
        %v288 = vadd.s32 %v282, 48
        %v289 = vadd.s32 %v282, 56
        %v290 = vadd.s32 %v282, 64
        %v291 = vadd.s32 %v282, 72
        %v292 = vadd.s32 %v282, 80
        %v293 = vadd.s32 %v282, 88
        %v294 = vadd.s32 %v282, 96
        %v295 = vadd.s32 %v282, 104
        %v296 = vadd.s32 %v282, 112
        %v297 = vadd.s32 %v282, 120
        %vm298 = vcmp.ne.s32.totalorder %v278, 255
        %vm299 = vcmp.gt.s32.totalorder %v278, 0
        %v300 = vsel %vm299, %v278, 0
        %vm301 = vcmp.lt.s32.totalorder %v300, 7
        %v302 = vsel %vm301, %v300, 7
        %v303 = vlaneseq
        %v304 = vshrl.u32 %v303, 7
        %v305 = vsub.s32 0, %v304
        %v306 = vrot.slane %v302, %v305
        %vm307 = vcmp.eq.s32.totalorder %v306, %v282
        %vm308 = vcmp.eq.s32.totalorder %v306, %v283
        %vm309 = vcmp.eq.s32.totalorder %v306, %v284
        %vm310 = vcmp.eq.s32.totalorder %v306, %v285
        %vm311 = vcmp.eq.s32.totalorder %v306, %v286
        %vm312 = vcmp.eq.s32.totalorder %v306, %v287
        %vm313 = vcmp.eq.s32.totalorder %v306, %v288
        %vm314 = vcmp.eq.s32.totalorder %v306, %v289
        %vm315 = vcmp.eq.s32.totalorder %v306, %v290
        %vm316 = vcmp.eq.s32.totalorder %v306, %v291
        %vm317 = vcmp.eq.s32.totalorder %v306, %v292
        %vm318 = vcmp.eq.s32.totalorder %v306, %v293
        %vm319 = vcmp.eq.s32.totalorder %v306, %v294
        %vm320 = vcmp.eq.s32.totalorder %v306, %v295
        %vm321 = vcmp.eq.s32.totalorder %v306, %v296
        %vm322 = vcmp.eq.s32.totalorder %v306, %v297
        %v323 = vsel %vm298, 1, 0
        %v324 = vlaneseq
        %v325 = vshrl.u32 %v324, 7
        %v326 = vsub.s32 0, %v325
        %v327 = vrot.slane %v323, %v326
        %vm328 = vcmp.eq.s32.totalorder %v327, 1
        %vm329 = vmand %vm307, %vm328
        %vm330 = vmand %vm308, %vm328
        %vm331 = vmand %vm309, %vm328
        %vm332 = vmand %vm310, %vm328
        %vm333 = vmand %vm311, %vm328
        %vm334 = vmand %vm312, %vm328
        %vm335 = vmand %vm313, %vm328
        %vm336 = vmand %vm314, %vm328
        %vm337 = vmand %vm315, %vm328
        %vm338 = vmand %vm316, %vm328
        %vm339 = vmand %vm317, %vm328
        %vm340 = vmand %vm318, %vm328
        %vm341 = vmand %vm319, %vm328
        %vm342 = vmand %vm320, %vm328
        %vm343 = vmand %vm321, %vm328
        %vm344 = vmand %vm322, %vm328
        %vm345 = vcmp.eq.s32.totalorder %v282, 8
        %vm346 = vcmp.eq.s32.totalorder %v283, 8
        %vm347 = vcmp.eq.s32.totalorder %v284, 8
        %vm348 = vcmp.eq.s32.totalorder %v285, 8
        %vm349 = vcmp.eq.s32.totalorder %v286, 8
        %vm350 = vcmp.eq.s32.totalorder %v287, 8
        %vm351 = vcmp.eq.s32.totalorder %v288, 8
        %vm352 = vcmp.eq.s32.totalorder %v289, 8
        %vm353 = vcmp.eq.s32.totalorder %v290, 8
        %vm354 = vcmp.eq.s32.totalorder %v291, 8
        %vm355 = vcmp.eq.s32.totalorder %v292, 8
        %vm356 = vcmp.eq.s32.totalorder %v293, 8
        %vm357 = vcmp.eq.s32.totalorder %v294, 8
        %vm358 = vcmp.eq.s32.totalorder %v295, 8
        %vm359 = vcmp.eq.s32.totalorder %v296, 8
        %vm360 = vcmp.eq.s32.totalorder %v297, 8
        %vm361 = vmor %vm329, %vm345
        %vm362 = vmor %vm330, %vm346
        %vm363 = vmor %vm331, %vm347
        %vm364 = vmor %vm332, %vm348
        %vm365 = vmor %vm333, %vm349
        %vm366 = vmor %vm334, %vm350
        %vm367 = vmor %vm335, %vm351
        %vm368 = vmor %vm336, %vm352
        %vm369 = vmor %vm337, %vm353
        %vm370 = vmor %vm338, %vm354
        %vm371 = vmor %vm339, %vm355
        %vm372 = vmor %vm340, %vm356
        %vm373 = vmor %vm341, %vm357
        %vm374 = vmor %vm342, %vm358
        %vm375 = vmor %vm343, %vm359
        %vm376 = vmor %vm344, %vm360
        %v377 = vsel %vm361, 1, 0
        %v378 = vsel %vm362, 1, 0
        %v379 = vsel %vm363, 1, 0
        %v380 = vsel %vm364, 1, 0
        %v381 = vsel %vm365, 1, 0
        %v382 = vsel %vm366, 1, 0
        %v383 = vsel %vm367, 1, 0
        %v384 = vsel %vm368, 1, 0
        %v385 = vsel %vm369, 1, 0
        %v386 = vsel %vm370, 1, 0
        %v387 = vsel %vm371, 1, 0
        %v388 = vsel %vm372, 1, 0
        %v389 = vsel %vm373, 1, 0
        %v390 = vsel %vm374, 1, 0
        %v391 = vsel %vm375, 1, 0
        %v392 = vsel %vm376, 1, 0
        %v393 = vcvt.s32.f32 %v377
        %v394 = vcvt.s32.f32 %v378
        %v395 = vcvt.s32.f32 %v379
        %v396 = vcvt.s32.f32 %v380
        %v397 = vcvt.s32.f32 %v381
        %v398 = vcvt.s32.f32 %v382
        %v399 = vcvt.s32.f32 %v383
        %v400 = vcvt.s32.f32 %v384
        %v401 = vcvt.s32.f32 %v385
        %v402 = vcvt.s32.f32 %v386
        %v403 = vcvt.s32.f32 %v387
        %v404 = vcvt.s32.f32 %v388
        %v405 = vcvt.s32.f32 %v389
        %v406 = vcvt.s32.f32 %v390
        %v407 = vcvt.s32.f32 %v391
        %v408 = vcvt.s32.f32 %v392
        %v409 = vld [vmem:[#allocation2] sm:$0xff]
        %v410 = vld [vmem:[#allocation2 + $0x8] sm:$0xff]
        %411 = vmatprep.subr.mxu0 0.0
        %412 = vmatpush1.xpose.msra.mxu0 %v393
        %413 = vmatprep.subr.mxu0 0.0
        %414 = vmatpush1.xpose.msra.mxu0 %v394
        %415 = vmatprep.subr.mxu0 0.0
        %416 = vmatpush1.xpose.msra.mxu0 %v395
        %417 = vmatprep.subr.mxu0 0.0
        %418 = vmatpush1.xpose.msra.mxu0 %v396
        %419 = vmatprep.subr.mxu0 0.0
        %420 = vmatpush1.xpose.msra.mxu0 %v397
        %421 = vmatprep.subr.mxu0 0.0
        %422 = vmatpush1.xpose.msra.mxu0 %v398
        %423 = vmatprep.subr.mxu0 0.0
        %424 = vmatpush1.xpose.msra.mxu0 %v399
        %425 = vmatprep.subr.mxu0 0.0
        %426 = vmatpush1.xpose.msra.mxu0 %v400
        %427 = vmatprep.subr.mxu0 0.0
        %428 = vmatpush1.xpose.msra.mxu0 %v401
        %429 = vmatprep.subr.mxu0 0.0
        %430 = vmatpush1.xpose.msra.mxu0 %v402
        %431 = vmatprep.subr.mxu0 0.0
        %432 = vmatpush1.xpose.msra.mxu0 %v403
        %433 = vmatprep.subr.mxu0 0.0
        %434 = vmatpush1.xpose.msra.mxu0 %v404
        %435 = vmatprep.subr.mxu0 0.0
        %436 = vmatpush1.xpose.msra.mxu0 %v405
        %437 = vmatprep.subr.mxu0 0.0
        %438 = vmatpush1.xpose.msra.mxu0 %v406
        %439 = vmatprep.subr.mxu0 0.0
        %440 = vmatpush1.xpose.msra.mxu0 %v407
        %441 = vmatprep.subr.mxu0 0.0
        %442 = vmatpush1.xpose.msra.mxu0 %v408
        %443 = vmatprep.subr.mxu0 0.0
        %444 = vmatpush1.xpose.msra.mxu0 0.0
        %445 = vmatprep.subr.mxu0 0.0
        %446 = vmatpush1.xpose.msra.mxu0 0.0
        %447 = vmatprep.subr.mxu0 0.0
        %448 = vmatpush1.xpose.msra.mxu0 0.0
        %449 = vmatprep.subr.mxu0 0.0
        %450 = vmatpush1.xpose.msra.mxu0 0.0
        %451 = vmatprep.subr.mxu0 0.0
        %452 = vmatpush1.xpose.msra.mxu0 0.0
        %453 = vmatprep.subr.mxu0 0.0
        %454 = vmatpush1.xpose.msra.mxu0 0.0
        %455 = vmatprep.subr.mxu0 0.0
        %456 = vmatpush1.xpose.msra.mxu0 0.0
        %457 = vmatprep.subr.mxu0 0.0
        %458 = vmatpush1.xpose.msra.mxu0 0.0
        %459 = vmatprep.subr.mxu0 0.0
        %460 = vmatpush1.xpose.msra.mxu0 0.0
        %461 = vmatprep.subr.mxu0 0.0
        %462 = vmatpush1.xpose.msra.mxu0 0.0
        %463 = vmatprep.subr.mxu0 0.0
        %464 = vmatpush1.xpose.msra.mxu0 0.0
        %465 = vmatprep.subr.mxu0 0.0
        %466 = vmatpush1.xpose.msra.mxu0 0.0
        %467 = vmatprep.subr.mxu0 0.0
        %468 = vmatpush1.xpose.msra.mxu0 0.0
        %469 = vmatprep.subr.mxu0 0.0
        %470 = vmatpush1.xpose.msra.mxu0 0.0
        %471 = vmatprep.subr.mxu0 0.0
        %472 = vmatpush1.xpose.msra.mxu0 0.0
        %473 = vmatprep.subr.mxu0 0.0
        %474 = vmatpush1.xpose.msra.mxu0 0.0
        %475 = vmatprep.mubr.f32.mxu0 0.0
        %476 = vmatmul.mubr.f32.gmra.mrb[0].mxu0 %v279
        %v477 = vpop.f32.mrb[0].mxu0
        %v478 = vadd.f32 0.0, %v477
        %v479 = vpop.f32.mrb[0].mxu0
        %480 = vmatprep.mubr.f32.mxu0 0.0
        %481 = vmatmul.mubr.f32.gmra.mrb[0].mxu0 %v280
        %v482 = vpop.f32.mrb[0].mxu0
        %v483 = vadd.f32 0.0, %v482
        %v484 = vpop.f32.mrb[0].mxu0
        %485 = vdwg.mxu0
        %v486 = vadd.f32 %v409, %v478
        %v487 = vadd.f32 %v410, %v483
        %488 = vst [vmem:[#allocation2] sm:$0xff] %v486
        %489 = vst [vmem:[#allocation2 + $0x8] sm:$0xff] %v487
        %p490 = scmp.eq.s32.totalorder %s30, 1
        // Predicated region
        $region45: #{tpu_custom_call.1} parent=31 // pred_check
          %p491 = pneg %p490
        $region46: #{tpu_custom_call.1} parent=31 // pred_check_branch
          %493 = sbr.rel (%p491) target = $region48
        $region47: #{tpu_custom_call.1} parent=31 // pred_region
          %v494 = vld [vmem:[#allocation2] sm:$0xff]
          %v495 = vld [vmem:[#allocation2 + $0x8] sm:$0xff]
          %v496 = vld [vmem:[%s269] sm:$0x1]
          %vm497 = vcmp.gt.f32.partialorder %v496, 0.0
          %v498 = vsel %vm497, %v496, 1024.0
          %v499 = vsel %vm497, 1, 0
          %v500 = vlaneseq
          %v501 = vshrl.u32 %v500, 7
          %v502 = vsub.s32 0, %v501
          %v503 = vrot.slane %v499, %v502
          %vm504 = vcmp.eq.s32.totalorder %v503, 1
          %506 = vset.pattern.permute.xlu0 8
          %507 = vperm.xlu0 %506, %v494
          %v508 = vpop.permute.xlu0 %507
          %511 = vset.pattern.permute.xlu0 8
          %512 = vperm.xlu0 %511, %v495
          %v513 = vpop.permute.xlu0 %512
          %v515 = vsel %vm504, %v494, %v508
          %v516 = vsel %vm504, %v495, %v513
          %v518 = vlaneseq
          %v519 = vshrl.u32 %v518, 7
          %v520 = vsub.s32 0, %v519
          %v521 = vrot.slane %v498, %v520
          %v523 = vrcp.pop %v521
          %v524 = vmul.f32 %v515, %v523
          %v525 = vmul.f32 %v516, %v523
          %526 = vst [vmem:[%s266] sm:$0xff] %v524
          %527 = vst [vmem:[%s266 + $0x8] sm:$0xff] %v525
        $region48: #{tpu_custom_call.1} parent=31 // pred_fallthru
          _
        %s528 = sand.u32 %s136, 1
        %s529 = scalar_lea.sflag [#allocation5], %s528
        %s530 = sand.u32 %s136, 1
        %s531 = smul.addr %s530, 16
        %s532 = scalar_lea.vmem [#allocation8], %s531
        // Predicated region
        $region49: #{tpu_custom_call.1} parent=31 // pred_check
          %p533 = pneg %p146
        $region50: #{tpu_custom_call.1} parent=31 // pred_check_branch
          %535 = sbr.rel (%p533) target = $region52
        $region51: #{tpu_custom_call.1} parent=31 // pred_region
          %s536 = smul.u32 2, %s29
          %s538 = ssub.s32 256, 256
          %539 = vsyncadd %s529, %s538
          %s540 = smul.addr %s28, 2
          %s541 = sadd.s32 %s536, %s540
          %s542 = smul.addr %s541, 128
          %s543 = scalar_lea.hbm %s3, %s542
          %s544 = sshll.u32 %s532, 4
          %s545 = int_to_ptr.vmem [resolvable:$true] %s544
          %550 = dma.vmem_to_hbm [thread:$0]  %s545, 256, %s543, %s529, 128, 128, 8
        $region52: #{tpu_custom_call.1} parent=31 // pred_fallthru
          _
      $region32: #{tpu_custom_call.1} parent=5 // pred_fallthru
        _
      %p551 = scmp.le.s32.totalorder 2, %s18
      // Predicated region
      $region53: #{tpu_custom_call.1} parent=5 // pred_check
        %p552 = pneg %p551
      $region54: #{tpu_custom_call.1} parent=5 // pred_check_branch
        %554 = sbr.rel (%p552) target = $region56
      $region55: #{tpu_custom_call.1} parent=5 // pred_region
        %s555 = ssub.s32 %s18, 2
        // Predicated region
        $region57: #{tpu_custom_call.1} parent=55 // pred_check
          %p556 = pneg %p152
        $region58: #{tpu_custom_call.1} parent=55 // pred_check_branch
          %558 = sbr.rel (%p556) target = $region60
        $region59: #{tpu_custom_call.1} parent=55 // pred_region
          %s559 = sand.u32 %s137, 1
          %s560 = scalar_lea.sflag [#allocation5], %s559
          %s561 = sand.u32 %s137, 1
          %s562 = smul.addr %s561, 16
          %s563 = scalar_lea.vmem [#allocation8], %s562
          %564 = dma.done %s560, 256
        $region60: #{tpu_custom_call.1} parent=55 // pred_fallthru
          _
      $region56: #{tpu_custom_call.1} parent=5 // pred_fallthru
        _
    $region6: #{tpu_custom_call.1} parent=1 // loop_footer
      %s22 = sadd.s32 1, %s18
    $region7: #{tpu_custom_call.1} parent=1 // loop_footer_branch
      %17 = sbr.rel target = $region3
    $region8: #{tpu_custom_call.1} parent=1 // loop_exit
      _
    %565 = vsyncpa [#allocation4], 1
    %s566 = scalar_lea.sflag [#allocation4], 1
    %567 = vsyncpa %s566, 1
    %568 = vsyncpa [#allocation7], 1
    %s569 = scalar_lea.sflag [#allocation7], 1
    %570 = vsyncpa %s569, 1
    %571 = vsyncpa [#allocation5], 1
    %s572 = scalar_lea.sflag [#allocation5], 1
    %573 = vsyncpa %s572, 1

</llo_original>
